<compile_context>
chip_gen: v7x
topology: tpu7x:2x2x1
jax: 0.10.0
libtpu: 0.0.40
codegen_flags: <defaults>
</compile_context>

<pallas_src>
import math

import jax
import jax.numpy as jnp
from jax.experimental import pallas as pl
from jax.experimental.pallas import tpu as pltpu


def _round_up(x: int, m: int) -> int:
    return (x + m - 1) // m * m


def _pick_tile(n: int, cap: int) -> int:
    """Largest multiple of 128 that divides `n` (a multiple of 128) and is <= cap."""
    best = 128
    t = 128
    while t <= min(n, cap):
        if n % t == 0:
            best = t
        t += 128
    return best


# ---------------------------------------------------------------------------
# Kernel 1: support = X @ W, emitted as hi/lo bf16 planes (hi + lo ~= f32 S)
# ---------------------------------------------------------------------------
def _support_kernel(x_ref, w_ref, hi_ref, lo_ref):
    s = jnp.dot(x_ref[...], w_ref[...], preferred_element_type=jnp.float32)
    hi = s.astype(jnp.bfloat16)
    lo = (s - hi.astype(jnp.float32)).astype(jnp.bfloat16)
    hi_ref[...] = hi
    lo_ref[...] = lo


# ---------------------------------------------------------------------------
# Kernel 2: output = A @ (S_hi + S_lo), tiled over (row tiles, reduction tiles)
# ---------------------------------------------------------------------------
def _make_aggregate_kernel(resident: bool, tk: int):
    def kernel(a_ref, s_hi_ref, s_lo_ref, out_ref):
        k = pl.program_id(1)

        # Output block index is constant across k -> resident accumulator.
        @pl.when(k == 0)
        def _():
            out_ref[...] = jnp.zeros_like(out_ref)

        a = a_ref[...]
        if a.dtype != jnp.bfloat16:
            # Cast per tile (cheap VPU work hidden under the HBM stream);
            # single-pass bf16 MXU matmul instead of multi-pass f32.
            a = a.astype(jnp.bfloat16)

        if resident:
            start = pl.multiple_of(k * tk, tk)
            s_hi = s_hi_ref[pl.ds(start, tk), :]
            s_lo = s_lo_ref[pl.ds(start, tk), :]
        else:
            s_hi = s_hi_ref[...]
            s_lo = s_lo_ref[...]

        out_ref[...] += (
            jnp.dot(a, s_hi, preferred_element_type=jnp.float32)
            + jnp.dot(a, s_lo, preferred_element_type=jnp.float32)
        )

    return kernel


def graph_convolution(adjacency, input_feature, W):
    """Pallas implementation of GraphConvolution.forward.

    adjacency:      [N, N]   (any numeric dtype; treated like torch's .float())
    input_feature:  [N, D_in]
    W:              [D_in, D_out]
    returns:        [N, D_out] float32

    Note: the adjacency is carried in bf16 on the MXU, which is exact for
    unweighted 0/1 adjacencies.  Weighted / normalized adjacencies pick up
    <= ~0.4% relative rounding on the edge weights.
    # TODO(synk): add a hi/lo-split adjacency path for full-f32 weighted graphs.
    """
    N = adjacency.shape[0]
    D_in = input_feature.shape[1]
    D_out = W.shape[1]

    Np = _round_up(N, 128)
    Dp = _round_up(D_out, 128)          # lane-dense output

    # --- per-generation VMEM budget (leave ~25% headroom for the compiler) --
    try:
        vmem_cap = int(pltpu.get_tpu_info().vmem_capacity_bytes)
    except Exception:
        vmem_cap = 64 * 1024 * 1024     # conservative (v7x per-TC)
    vmem_budget = int(vmem_cap * 3 // 4)

    # --- cheap feature / weight padding (O(N*D_in + D_in*Dp)) ---------------
    x_p = input_feature.astype(jnp.float32)
    if Np != N:
        x_p = jnp.pad(x_p, ((0, Np - N), (0, 0)))
    w_p = W.astype(jnp.float32)
    if Dp != D_out:
        w_p = jnp.pad(w_p, ((0, 0), (0, Dp - D_out)))

    # --- adjacency: avoid the wrapper-side N^2 copy whenever possible -------
    if Np == N:
        a_in = adjacency
        if a_in.dtype != jnp.bfloat16 and a_in.dtype != jnp.float32:
            a_in = a_in.astype(jnp.float32)         # mimic torch .float()
    else:
        # Padding forces a materialized copy anyway; do it in bf16 so both
        # the copy and the kernel stream are as small as possible.
        a_in = jnp.pad(adjacency.astype(jnp.bfloat16),
                       ((0, Np - N), (0, Np - N)))
    a_bytes = jnp.dtype(a_in.dtype).itemsize

    # --- tile selection & resident-support decision -------------------------
    tm = _pick_tile(Np, 512)            # row tile
    tk = _pick_tile(Np, 1024)           # reduction tile (cheap to grow)
    s_plane = Np * Dp * 2               # one bf16 support plane
    resident_cost = (2 * tm * tk * a_bytes      # A tiles (double-buffered)
                     + 2 * 2 * s_plane          # S_hi + S_lo (budget 2 bufs)
                     + 2 * tm * Dp * 4)         # output tiles
    resident = resident_cost <= vmem_budget
    if not resident:
        # Streamed support: larger row tile cuts the support re-read factor.
        tm = _pick_tile(Np, 1024)
        tk = _pick_tile(Np, 512)

    # --- pass 1: support = X @ W, emitted as bf16 hi/lo planes --------------
    ts = _pick_tile(Np, 512)
    s_hi, s_lo = pl.pallas_call(
        _support_kernel,
        out_shape=(jax.ShapeDtypeStruct((Np, Dp), jnp.bfloat16),
                   jax.ShapeDtypeStruct((Np, Dp), jnp.bfloat16)),
        grid_spec=pltpu.PrefetchScalarGridSpec(
            num_scalar_prefetch=0,
            grid=(Np // ts,),
            in_specs=[
                pl.BlockSpec((ts, D_in), lambda i: (i, 0)),
                pl.BlockSpec((D_in, Dp), lambda i: (0, 0)),
            ],
            out_specs=[
                pl.BlockSpec((ts, Dp), lambda i: (i, 0)),
                pl.BlockSpec((ts, Dp), lambda i: (i, 0)),
            ],
        ),
        compiler_params=pltpu.CompilerParams(
            dimension_semantics=("parallel",),
        ),
        cost_estimate=pl.CostEstimate(
            flops=2 * Np * D_in * Dp,
            transcendentals=0,
            bytes_accessed=4 * Np * D_in + 4 * D_in * Dp + 2 * 2 * Np * Dp,
        ),
    )(x_p, w_p)

    # --- pass 2: output = A @ support --------------------------------------
    if resident:
        # Full-array block, constant index map -> fetched once, VMEM-resident.
        s_spec = pl.BlockSpec((Np, Dp), lambda i, k: (0, 0))
        s_bytes = 2 * s_plane
    else:
        s_spec = pl.BlockSpec((tk, Dp), lambda i, k: (k, 0))
        s_bytes = (Np // tm) * 2 * s_plane

    out_p = pl.pallas_call(
        _make_aggregate_kernel(resident, tk),
        out_shape=jax.ShapeDtypeStruct((Np, Dp), jnp.float32),
        grid_spec=pltpu.PrefetchScalarGridSpec(
            num_scalar_prefetch=0,
            grid=(Np // tm, Np // tk),          # reduction axis last
            in_specs=[
                pl.BlockSpec((tm, tk), lambda i, k: (i, k)),
                s_spec,
                s_spec,
            ],
            out_specs=pl.BlockSpec((tm, Dp), lambda i, k: (i, 0)),
        ),
        compiler_params=pltpu.CompilerParams(
            dimension_semantics=("parallel", "arbitrary"),
            vmem_limit_bytes=vmem_budget,
        ),
        cost_estimate=pl.CostEstimate(
            flops=2 * 2 * Np * Np * Dp,         # hi + lo MXU passes
            transcendentals=0,
            bytes_accessed=Np * Np * a_bytes + s_bytes + Np * Dp * 4,
        ),
    )(a_in, s_hi, s_lo)

    # Strip row padding and the lane-dense column padding.
    return out_p[:N, :D_out]


def xavier_uniform(key, shape, gain):
    fan_in, fan_out = shape
    bound = gain * math.sqrt(6.0 / (fan_in + fan_out))
    return jax.random.uniform(
        key, shape, dtype=jnp.float32, minval=-bound, maxval=bound
    )


if __name__ == "__main__":
    key = jax.random.PRNGKey(0)
    k_adj, k_x, k_w = jax.random.split(key, 3)

    N = 512        # number of graph nodes
    D_in = 64      # input feature dim
    D_out = 16     # output feature dim

    # Deterministic synthetic inputs: 0/1 symmetric adjacency with self-loops.
    adjacency = (jax.random.uniform(k_adj, (N, N)) > 0.85).astype(jnp.float32)
    adjacency = jnp.clip(adjacency + adjacency.T + jnp.eye(N), 0.0, 1.0)
    input_feature = jax.random.normal(k_x, (N, D_in), dtype=jnp.float32)

    # Parameter: W ~ xavier_uniform_(gain=1.414), as in the module __init__.
    W = xavier_uniform(k_w, (D_in, D_out), gain=1.414)

    out = graph_convolution(adjacency, input_feature, W)
    out = jax.block_until_ready(out)

    # Reference check in plain JAX (f32 throughout, like torch.mm).
    ref = adjacency @ (input_feature @ W)
    assert out.shape == (N, D_out)
    err = float(jnp.max(jnp.abs(out - ref)))
    assert jnp.allclose(out, ref, atol=1e-3, rtol=1e-3), err

    print("KERNEL_OK")
</pallas_src>

<mosaic_0001>
module attributes {stable_mosaic.version = 11 : i64} {
  func.func @_support_kernel(%arg0: i32, %arg1: memref<512x64xf32, #tpu.memory_space<vmem>>, %arg2: memref<64x128xf32, #tpu.memory_space<vmem>>, %arg3: memref<512x128xbf16, #tpu.memory_space<vmem>>, %arg4: memref<512x128xbf16, #tpu.memory_space<vmem>>) attributes {dimension_semantics = [#tpu.dimension_semantics<parallel>], iteration_bounds = array<i64: 1>, scalar_prefetch = 0 : i64, scratch_operands = 0 : i64, tpu.core_type = #tpu.core_type<tc>, window_params = [{transform_indices = @transform_0, window_bounds = array<i64: 512, 64>}, {pipeline_mode = #tpu.pipeline_mode<synchronous>, transform_indices = @transform_1, window_bounds = array<i64: 64, 128>}, {transform_indices = @transform_2, window_bounds = array<i64: 512, 128>}, {transform_indices = @transform_3, window_bounds = array<i64: 512, 128>}]} {
    %c0 = arith.constant 0 : index
    %c0_0 = arith.constant 0 : index
    %0 = vector.load %arg1[%c0, %c0_0] : memref<512x64xf32, #tpu.memory_space<vmem>>, vector<512x64xf32>
    %c0_1 = arith.constant 0 : index
    %c0_2 = arith.constant 0 : index
    %1 = vector.load %arg2[%c0_1, %c0_2] : memref<64x128xf32, #tpu.memory_space<vmem>>, vector<64x128xf32>
    %cst = arith.constant dense<0.000000e+00> : vector<512x128xf32>
    %2 = tpu.matmul %0, %1, %cst {dimension_numbers = #tpu.dot_dimension_numbers<[1], [0], [0], [1], [0, 0, 1, 1], [], []>} : vector<512x64xf32>, vector<64x128xf32>, vector<512x128xf32> -> vector<512x128xf32>
    %3 = arith.truncf %2 : vector<512x128xf32> to vector<512x128xbf16>
    %4 = arith.extf %3 : vector<512x128xbf16> to vector<512x128xf32>
    %5 = arith.subf %2, %4 : vector<512x128xf32>
    %6 = arith.truncf %5 : vector<512x128xf32> to vector<512x128xbf16>
    %c0_3 = arith.constant 0 : index
    %c0_4 = arith.constant 0 : index
    %7 = vector.load %arg3[%c0_3, %c0_4] : memref<512x128xbf16, #tpu.memory_space<vmem>>, vector<512x128xbf16>
    tpu.vector_store %arg3[%c0_3, %c0_4], %3 {strides = array<i32>} : memref<512x128xbf16, #tpu.memory_space<vmem>>, vector<512x128xbf16>,
    %c0_5 = arith.constant 0 : index
    %c0_6 = arith.constant 0 : index
    %8 = vector.load %arg4[%c0_5, %c0_6] : memref<512x128xbf16, #tpu.memory_space<vmem>>, vector<512x128xbf16>
    tpu.vector_store %arg4[%c0_5, %c0_6], %6 {strides = array<i32>} : memref<512x128xbf16, #tpu.memory_space<vmem>>, vector<512x128xbf16>,
    return
  }
  func.func @transform_0(%arg0: i32) -> (i32, i32) {
    %c0_i32 = arith.constant 0 : i32
    %c0_i32_0 = arith.constant 0 : i32
    return %arg0, %c0_i32 : i32, i32
  }
  func.func @transform_1(%arg0: i32) -> (i32, i32) {
    %c0_i32 = arith.constant 0 : i32
    %c0_i32_0 = arith.constant 0 : i32
    %c0_i32_1 = arith.constant 0 : i32
    return %c0_i32, %c0_i32_0 : i32, i32
  }
  func.func @transform_2(%arg0: i32) -> (i32, i32) {
    %c0_i32 = arith.constant 0 : i32
    %c0_i32_0 = arith.constant 0 : i32
    return %arg0, %c0_i32 : i32, i32
  }
  func.func @transform_3(%arg0: i32) -> (i32, i32) {
    %c0_i32 = arith.constant 0 : i32
    %c0_i32_0 = arith.constant 0 : i32
    return %arg0, %c0_i32 : i32, i32
  }
}

</mosaic_0001>

<llo_original>
// kernel: tpu_custom_call.1
$region0: #{tpu_custom_call.1}
  #allocation0 [shape = 'u32[]', space=smem, size = 0x4, offset = 0x4, fixed_abs, tag = 'smem constant byte address 0x4 - core index']
  #allocation1 [shape = 'u32[144,128]{1,0:T(1,128)}', space=vmem, size = 0x12000, scoped, tag = 'internal scratch']
  %s0 = inlined_call_operand.vmem [shape: f32[512,64], index: 0, kind: input, shape index: {}]
  %s1 = inlined_call_operand.vmem [shape: f32[64,128], index: 1, kind: input, shape index: {}]
  %s2 = inlined_call_operand.hbm [shape: bf16[512,128], index: 2, kind: output, shape index: {0}]
  %s3 = inlined_call_operand.hbm [shape: bf16[512,128], index: 3, kind: output, shape index: {1}]
  %4 = xla_tuple %s2, %s3
  %s5 = sld [smem:[#allocation0]]
  $region26: #{tpu_custom_call.1} parent=0
    _
  %s7 = ssub.s32 1, %s5
  %s8 = scalar_select 0, %s7, %s5
  $region1: #{tpu_custom_call.1} parent=0
    #allocation2 [shape = 'u8[131072]{0}', space=vmem, size = 0x20000, scoped, tag = 'output window, operand 0, single buffered']
    #allocation3 [shape = 's32[1]{0}', space=sflag, size = 0x4, scoped, tag = 'scoped memory for tpu_custom_call.1']
    #allocation4 [shape = 'u8[131072]{0}', space=vmem, size = 0x20000, scoped, tag = 'output window, operand 1, single buffered']
    #allocation5 [shape = 's32[1]{0}', space=sflag, size = 0x4, scoped, tag = 'scoped memory for tpu_custom_call.1']
    %9 = vsyncpa [#allocation3], 0
    %10 = vsyncpa [#allocation5], 0
    // Predicated region
    $region2: #{tpu_custom_call.1} parent=1 // pred_check
      _
    $region3: #{tpu_custom_call.1} parent=1 // pred_check_branch
      %12 = sbr.rel (0) target = $region5
    $region4: #{tpu_custom_call.1} parent=1 // pred_region
      _
    $region5: #{tpu_custom_call.1} parent=1 // pred_fallthru
      _
    // Predicated region
    $region6: #{tpu_custom_call.1} parent=1 // pred_check
      _
    $region7: #{tpu_custom_call.1} parent=1 // pred_check_branch
      %14 = sbr.rel (0) target = $region9
    $region8: #{tpu_custom_call.1} parent=1 // pred_region
      _
    $region9: #{tpu_custom_call.1} parent=1 // pred_fallthru
      _
    %v15 = vld [vmem:[%s0] sm:$0xff]
    %v16 = vld [vmem:[%s0 + $0x8] sm:$0xff]
    %v17 = vld [vmem:[%s0 + $0x10] sm:$0xff]
    %v18 = vld [vmem:[%s0 + $0x18] sm:$0xff]
    %v19 = vld [vmem:[%s0 + $0x20] sm:$0xff]
    %v20 = vld [vmem:[%s0 + $0x28] sm:$0xff]
    %v21 = vld [vmem:[%s0 + $0x30] sm:$0xff]
    %v22 = vld [vmem:[%s0 + $0x38] sm:$0xff]
    %v23 = vld [vmem:[%s0 + $0x40] sm:$0xff]
    %v24 = vld [vmem:[%s0 + $0x48] sm:$0xff]
    %v25 = vld [vmem:[%s0 + $0x50] sm:$0xff]
    %v26 = vld [vmem:[%s0 + $0x58] sm:$0xff]
    %v27 = vld [vmem:[%s0 + $0x60] sm:$0xff]
    %v28 = vld [vmem:[%s0 + $0x68] sm:$0xff]
    %v29 = vld [vmem:[%s0 + $0x70] sm:$0xff]
    %v30 = vld [vmem:[%s0 + $0x78] sm:$0xff]
    %v31 = vld [vmem:[%s0 + $0x80] sm:$0xff]
    %v32 = vld [vmem:[%s0 + $0x88] sm:$0xff]
    %v33 = vld [vmem:[%s0 + $0x90] sm:$0xff]
    %v34 = vld [vmem:[%s0 + $0x98] sm:$0xff]
    %v35 = vld [vmem:[%s0 + $0xa0] sm:$0xff]
    %v36 = vld [vmem:[%s0 + $0xa8] sm:$0xff]
    %v37 = vld [vmem:[%s0 + $0xb0] sm:$0xff]
    %v38 = vld [vmem:[%s0 + $0xb8] sm:$0xff]
    %v39 = vld [vmem:[%s0 + $0xc0] sm:$0xff]
    %v40 = vld [vmem:[%s0 + $0xc8] sm:$0xff]
    %v41 = vld [vmem:[%s0 + $0xd0] sm:$0xff]
    %v42 = vld [vmem:[%s0 + $0xd8] sm:$0xff]
    %v43 = vld [vmem:[%s0 + $0xe0] sm:$0xff]
    %v44 = vld [vmem:[%s0 + $0xe8] sm:$0xff]
    %v45 = vld [vmem:[%s0 + $0xf0] sm:$0xff]
    %v46 = vld [vmem:[%s0 + $0xf8] sm:$0xff]
    %v47 = vld [vmem:[%s0 + $0x100] sm:$0xff]
    %v48 = vld [vmem:[%s0 + $0x108] sm:$0xff]
    %v49 = vld [vmem:[%s0 + $0x110] sm:$0xff]
    %v50 = vld [vmem:[%s0 + $0x118] sm:$0xff]
    %v51 = vld [vmem:[%s0 + $0x120] sm:$0xff]
    %v52 = vld [vmem:[%s0 + $0x128] sm:$0xff]
    %v53 = vld [vmem:[%s0 + $0x130] sm:$0xff]
    %v54 = vld [vmem:[%s0 + $0x138] sm:$0xff]
    %v55 = vld [vmem:[%s0 + $0x140] sm:$0xff]
    %v56 = vld [vmem:[%s0 + $0x148] sm:$0xff]
    %v57 = vld [vmem:[%s0 + $0x150] sm:$0xff]
    %v58 = vld [vmem:[%s0 + $0x158] sm:$0xff]
    %v59 = vld [vmem:[%s0 + $0x160] sm:$0xff]
    %v60 = vld [vmem:[%s0 + $0x168] sm:$0xff]
    %v61 = vld [vmem:[%s0 + $0x170] sm:$0xff]
    %v62 = vld [vmem:[%s0 + $0x178] sm:$0xff]
    %v63 = vld [vmem:[%s0 + $0x180] sm:$0xff]
    %v64 = vld [vmem:[%s0 + $0x188] sm:$0xff]
    %v65 = vld [vmem:[%s0 + $0x190] sm:$0xff]
    %v66 = vld [vmem:[%s0 + $0x198] sm:$0xff]
    %v67 = vld [vmem:[%s0 + $0x1a0] sm:$0xff]
    %v68 = vld [vmem:[%s0 + $0x1a8] sm:$0xff]
    %v69 = vld [vmem:[%s0 + $0x1b0] sm:$0xff]
    %v70 = vld [vmem:[%s0 + $0x1b8] sm:$0xff]
    %v71 = vld [vmem:[%s0 + $0x1c0] sm:$0xff]
    %v72 = vld [vmem:[%s0 + $0x1c8] sm:$0xff]
    %v73 = vld [vmem:[%s0 + $0x1d0] sm:$0xff]
    %v74 = vld [vmem:[%s0 + $0x1d8] sm:$0xff]
    %v75 = vld [vmem:[%s0 + $0x1e0] sm:$0xff]
    %v76 = vld [vmem:[%s0 + $0x1e8] sm:$0xff]
    %v77 = vld [vmem:[%s0 + $0x1f0] sm:$0xff]
    %v78 = vld [vmem:[%s0 + $0x1f8] sm:$0xff]
    %v79 = vld [vmem:[%s1] sm:$0xff]
    %v80 = vld [vmem:[%s1 + $0x8] sm:$0xff]
    %v81 = vld [vmem:[%s1 + $0x10] sm:$0xff]
    %v82 = vld [vmem:[%s1 + $0x18] sm:$0xff]
    %v83 = vld [vmem:[%s1 + $0x20] sm:$0xff]
    %v84 = vld [vmem:[%s1 + $0x28] sm:$0xff]
    %v85 = vld [vmem:[%s1 + $0x30] sm:$0xff]
    %v86 = vld [vmem:[%s1 + $0x38] sm:$0xff]
    %vm87 = vcmask 523264
    %v89 = vsel %vm87, %v15, 0
    %v92 = vsel %vm87, %v16, 0
    %v95 = vsel %vm87, %v17, 0
    %v98 = vsel %vm87, %v18, 0
    %v101 = vsel %vm87, %v19, 0
    %v104 = vsel %vm87, %v20, 0
    %v107 = vsel %vm87, %v21, 0
    %v110 = vsel %vm87, %v22, 0
    %v113 = vsel %vm87, %v23, 0
    %v116 = vsel %vm87, %v24, 0
    %v119 = vsel %vm87, %v25, 0
    %v122 = vsel %vm87, %v26, 0
    %v125 = vsel %vm87, %v27, 0
    %v128 = vsel %vm87, %v28, 0
    %v131 = vsel %vm87, %v29, 0
    %v134 = vsel %vm87, %v30, 0
    %v137 = vsel %vm87, %v31, 0
    %v140 = vsel %vm87, %v32, 0
    %v143 = vsel %vm87, %v33, 0
    %v146 = vsel %vm87, %v34, 0
    %v149 = vsel %vm87, %v35, 0
    %v152 = vsel %vm87, %v36, 0
    %v155 = vsel %vm87, %v37, 0
    %v158 = vsel %vm87, %v38, 0
    %v161 = vsel %vm87, %v39, 0
    %v164 = vsel %vm87, %v40, 0
    %v167 = vsel %vm87, %v41, 0
    %v170 = vsel %vm87, %v42, 0
    %v173 = vsel %vm87, %v43, 0
    %v176 = vsel %vm87, %v44, 0
    %v179 = vsel %vm87, %v45, 0
    %v182 = vsel %vm87, %v46, 0
    %v185 = vsel %vm87, %v47, 0
    %v188 = vsel %vm87, %v48, 0
    %v191 = vsel %vm87, %v49, 0
    %v194 = vsel %vm87, %v50, 0
    %v197 = vsel %vm87, %v51, 0
    %v200 = vsel %vm87, %v52, 0
    %v203 = vsel %vm87, %v53, 0
    %v206 = vsel %vm87, %v54, 0
    %v209 = vsel %vm87, %v55, 0
    %v212 = vsel %vm87, %v56, 0
    %v215 = vsel %vm87, %v57, 0
    %v218 = vsel %vm87, %v58, 0
    %v221 = vsel %vm87, %v59, 0
    %v224 = vsel %vm87, %v60, 0
    %v227 = vsel %vm87, %v61, 0
    %v230 = vsel %vm87, %v62, 0
    %v233 = vsel %vm87, %v63, 0
    %v236 = vsel %vm87, %v64, 0
    %v239 = vsel %vm87, %v65, 0
    %v242 = vsel %vm87, %v66, 0
    %v245 = vsel %vm87, %v67, 0
    %v248 = vsel %vm87, %v68, 0
    %v251 = vsel %vm87, %v69, 0
    %v254 = vsel %vm87, %v70, 0
    %v257 = vsel %vm87, %v71, 0
    %v260 = vsel %vm87, %v72, 0
    %v263 = vsel %vm87, %v73, 0
    %v266 = vsel %vm87, %v74, 0
    %v269 = vsel %vm87, %v75, 0
    %v272 = vsel %vm87, %v76, 0
    %v275 = vsel %vm87, %v77, 0
    %v278 = vsel %vm87, %v78, 0
    %280 = vmatprep.subr.mxu0 0.0
    %281 = vmatpush1.msra.mxu0 %v79
    %282 = vmatprep.subr.mxu0 0.0
    %283 = vmatpush1.msra.mxu0 %v80
    %284 = vmatprep.subr.mxu0 0.0
    %285 = vmatpush1.msra.mxu0 %v81
    %286 = vmatprep.subr.mxu0 0.0
    %287 = vmatpush1.msra.mxu0 %v82
    %288 = vmatprep.subr.mxu0 0.0
    %289 = vmatpush1.msra.mxu0 %v83
    %290 = vmatprep.subr.mxu0 0.0
    %291 = vmatpush1.msra.mxu0 %v84
    %292 = vmatprep.subr.mxu0 0.0
    %293 = vmatpush1.msra.mxu0 %v85
    %294 = vmatprep.subr.mxu0 0.0
    %295 = vmatpush1.msra.mxu0 %v86
    %296 = vmatprep.subr.mxu0 0.0
    %297 = vmatpush1.msra.mxu0 0.0
    %298 = vmatprep.subr.mxu0 0.0
    %299 = vmatpush1.msra.mxu0 0.0
    %300 = vmatprep.subr.mxu0 0.0
    %301 = vmatpush1.msra.mxu0 0.0
    %302 = vmatprep.subr.mxu0 0.0
    %303 = vmatpush1.msra.mxu0 0.0
    %304 = vmatprep.subr.mxu0 0.0
    %305 = vmatpush1.msra.mxu0 0.0
    %306 = vmatprep.subr.mxu0 0.0
    %307 = vmatpush1.msra.mxu0 0.0
    %308 = vmatprep.subr.mxu0 0.0
    %309 = vmatpush1.msra.mxu0 0.0
    %310 = vmatprep.subr.mxu0 0.0
    %311 = vmatpush1.msra.mxu0 0.0
    %312 = vmatprep.subr.mxu0 0.0
    %313 = vmatpush1.msra.mxu0 0.0
    %314 = vmatprep.subr.mxu0 0.0
    %315 = vmatpush1.msra.mxu0 0.0
    %316 = vmatprep.subr.mxu0 0.0
    %317 = vmatpush1.msra.mxu0 0.0
    %318 = vmatprep.subr.mxu0 0.0
    %319 = vmatpush1.msra.mxu0 0.0
    %320 = vmatprep.subr.mxu0 0.0
    %321 = vmatpush1.msra.mxu0 0.0
    %322 = vmatprep.subr.mxu0 0.0
    %323 = vmatpush1.msra.mxu0 0.0
    %324 = vmatprep.subr.mxu0 0.0
    %325 = vmatpush1.msra.mxu0 0.0
    %326 = vmatprep.subr.mxu0 0.0
    %327 = vmatpush1.msra.mxu0 0.0
    %328 = vmatprep.subr.mxu0 0.0
    %329 = vmatpush1.msra.mxu0 0.0
    %330 = vmatprep.subr.mxu0 0.0
    %331 = vmatpush1.msra.mxu0 0.0
    %332 = vmatprep.subr.mxu0 0.0
    %333 = vmatpush1.msra.mxu0 0.0
    %334 = vmatprep.subr.mxu0 0.0
    %335 = vmatpush1.msra.mxu0 0.0
    %336 = vmatprep.subr.mxu0 0.0
    %337 = vmatpush1.msra.mxu0 0.0
    %338 = vmatprep.subr.mxu0 0.0
    %339 = vmatpush1.msra.mxu0 0.0
    %340 = vmatprep.subr.mxu0 0.0
    %341 = vmatpush1.msra.mxu0 0.0
    %342 = vmatprep.subr.mxu0 0.0
    %343 = vmatpush1.msra.mxu0 0.0
    %344 = vmatprep.mubr.f32.mxu0 0.0
    %345 = vmatmul.mubr.f32.gmra.mrb[0].mxu0 %v89
    %v346 = vpop.f32.mrb[0].mxu0
    %v347 = vadd.f32 0.0, %v346
    %v348 = vpop.f32.mrb[0].mxu0
    %349 = vmatprep.mubr.f32.mxu0 0.0
    %350 = vmatmul.mubr.f32.gmra.mrb[0].mxu0 %v92
    %v351 = vpop.f32.mrb[0].mxu0
    %v352 = vadd.f32 0.0, %v351
    %v353 = vpop.f32.mrb[0].mxu0
    %354 = vmatprep.mubr.f32.mxu0 0.0
    %355 = vmatmul.mubr.f32.gmra.mrb[0].mxu0 %v95
    %v356 = vpop.f32.mrb[0].mxu0
    %v357 = vadd.f32 0.0, %v356
    %v358 = vpop.f32.mrb[0].mxu0
    %359 = vmatprep.mubr.f32.mxu0 0.0
    %360 = vmatmul.mubr.f32.gmra.mrb[0].mxu0 %v98
    %v361 = vpop.f32.mrb[0].mxu0
    %v362 = vadd.f32 0.0, %v361
    %v363 = vpop.f32.mrb[0].mxu0
    %364 = vmatprep.mubr.f32.mxu0 0.0
    %365 = vmatmul.mubr.f32.gmra.mrb[0].mxu0 %v101
    %v366 = vpop.f32.mrb[0].mxu0
    %v367 = vadd.f32 0.0, %v366
    %v368 = vpop.f32.mrb[0].mxu0
    %369 = vmatprep.mubr.f32.mxu0 0.0
    %370 = vmatmul.mubr.f32.gmra.mrb[0].mxu0 %v104
    %v371 = vpop.f32.mrb[0].mxu0
    %v372 = vadd.f32 0.0, %v371
    %v373 = vpop.f32.mrb[0].mxu0
    %374 = vmatprep.mubr.f32.mxu0 0.0
    %375 = vmatmul.mubr.f32.gmra.mrb[0].mxu0 %v107
    %v376 = vpop.f32.mrb[0].mxu0
    %v377 = vadd.f32 0.0, %v376
    %v378 = vpop.f32.mrb[0].mxu0
    %379 = vmatprep.mubr.f32.mxu0 0.0
    %380 = vmatmul.mubr.f32.gmra.mrb[0].mxu0 %v110
    %v381 = vpop.f32.mrb[0].mxu0
    %v382 = vadd.f32 0.0, %v381
    %v383 = vpop.f32.mrb[0].mxu0
    %384 = vmatprep.mubr.f32.mxu0 0.0
    %385 = vmatmul.mubr.f32.gmra.mrb[0].mxu0 %v113
    %v386 = vpop.f32.mrb[0].mxu0
    %v387 = vadd.f32 0.0, %v386
    %v388 = vpop.f32.mrb[0].mxu0
    %389 = vmatprep.mubr.f32.mxu0 0.0
    %390 = vmatmul.mubr.f32.gmra.mrb[0].mxu0 %v116
    %v391 = vpop.f32.mrb[0].mxu0
    %v392 = vadd.f32 0.0, %v391
    %v393 = vpop.f32.mrb[0].mxu0
    %394 = vmatprep.mubr.f32.mxu0 0.0
    %395 = vmatmul.mubr.f32.gmra.mrb[0].mxu0 %v119
    %v396 = vpop.f32.mrb[0].mxu0
    %v397 = vadd.f32 0.0, %v396
    %v398 = vpop.f32.mrb[0].mxu0
    %399 = vmatprep.mubr.f32.mxu0 0.0
    %400 = vmatmul.mubr.f32.gmra.mrb[0].mxu0 %v122
    %v401 = vpop.f32.mrb[0].mxu0
    %v402 = vadd.f32 0.0, %v401
    %v403 = vpop.f32.mrb[0].mxu0
    %404 = vmatprep.mubr.f32.mxu0 0.0
    %405 = vmatmul.mubr.f32.gmra.mrb[0].mxu0 %v125
    %v406 = vpop.f32.mrb[0].mxu0
    %v407 = vadd.f32 0.0, %v406
    %v408 = vpop.f32.mrb[0].mxu0
    %409 = vmatprep.mubr.f32.mxu0 0.0
    %410 = vmatmul.mubr.f32.gmra.mrb[0].mxu0 %v128
    %v411 = vpop.f32.mrb[0].mxu0
    %v412 = vadd.f32 0.0, %v411
    %v413 = vpop.f32.mrb[0].mxu0
    %414 = vmatprep.mubr.f32.mxu0 0.0
    %415 = vmatmul.mubr.f32.gmra.mrb[0].mxu0 %v131
    %v416 = vpop.f32.mrb[0].mxu0
    %v417 = vadd.f32 0.0, %v416
    %v418 = vpop.f32.mrb[0].mxu0
    %419 = vmatprep.mubr.f32.mxu0 0.0
    %420 = vmatmul.mubr.f32.gmra.mrb[0].mxu0 %v134
    %v421 = vpop.f32.mrb[0].mxu0
    %v422 = vadd.f32 0.0, %v421
    %v423 = vpop.f32.mrb[0].mxu0
    %424 = vmatprep.mubr.f32.mxu0 0.0
    %425 = vmatmul.mubr.f32.gmra.mrb[0].mxu0 %v137
    %v426 = vpop.f32.mrb[0].mxu0
    %v427 = vadd.f32 0.0, %v426
    %v428 = vpop.f32.mrb[0].mxu0
    %429 = vmatprep.mubr.f32.mxu0 0.0
    %430 = vmatmul.mubr.f32.gmra.mrb[0].mxu0 %v140
    %v431 = vpop.f32.mrb[0].mxu0
    %v432 = vadd.f32 0.0, %v431
    %v433 = vpop.f32.mrb[0].mxu0
    %434 = vmatprep.mubr.f32.mxu0 0.0
    %435 = vmatmul.mubr.f32.gmra.mrb[0].mxu0 %v143
    %v436 = vpop.f32.mrb[0].mxu0
    %v437 = vadd.f32 0.0, %v436
    %v438 = vpop.f32.mrb[0].mxu0
    %439 = vmatprep.mubr.f32.mxu0 0.0
    %440 = vmatmul.mubr.f32.gmra.mrb[0].mxu0 %v146
    %v441 = vpop.f32.mrb[0].mxu0
    %v442 = vadd.f32 0.0, %v441
    %v443 = vpop.f32.mrb[0].mxu0
    %444 = vmatprep.mubr.f32.mxu0 0.0
    %445 = vmatmul.mubr.f32.gmra.mrb[0].mxu0 %v149
    %v446 = vpop.f32.mrb[0].mxu0
    %v447 = vadd.f32 0.0, %v446
    %v448 = vpop.f32.mrb[0].mxu0
    %449 = vmatprep.mubr.f32.mxu0 0.0
    %450 = vmatmul.mubr.f32.gmra.mrb[0].mxu0 %v152
    %v451 = vpop.f32.mrb[0].mxu0
    %v452 = vadd.f32 0.0, %v451
    %v453 = vpop.f32.mrb[0].mxu0
    %454 = vmatprep.mubr.f32.mxu0 0.0
    %455 = vmatmul.mubr.f32.gmra.mrb[0].mxu0 %v155
    %v456 = vpop.f32.mrb[0].mxu0
    %v457 = vadd.f32 0.0, %v456
    %v458 = vpop.f32.mrb[0].mxu0
    %459 = vmatprep.mubr.f32.mxu0 0.0
    %460 = vmatmul.mubr.f32.gmra.mrb[0].mxu0 %v158
    %v461 = vpop.f32.mrb[0].mxu0
    %v462 = vadd.f32 0.0, %v461
    %v463 = vpop.f32.mrb[0].mxu0
    %464 = vmatprep.mubr.f32.mxu0 0.0
    %465 = vmatmul.mubr.f32.gmra.mrb[0].mxu0 %v161
    %v466 = vpop.f32.mrb[0].mxu0
    %v467 = vadd.f32 0.0, %v466
    %v468 = vpop.f32.mrb[0].mxu0
    %469 = vmatprep.mubr.f32.mxu0 0.0
    %470 = vmatmul.mubr.f32.gmra.mrb[0].mxu0 %v164
    %v471 = vpop.f32.mrb[0].mxu0
    %v472 = vadd.f32 0.0, %v471
    %v473 = vpop.f32.mrb[0].mxu0
    %474 = vmatprep.mubr.f32.mxu0 0.0
    %475 = vmatmul.mubr.f32.gmra.mrb[0].mxu0 %v167
    %v476 = vpop.f32.mrb[0].mxu0
    %v477 = vadd.f32 0.0, %v476
    %v478 = vpop.f32.mrb[0].mxu0
    %479 = vmatprep.mubr.f32.mxu0 0.0
    %480 = vmatmul.mubr.f32.gmra.mrb[0].mxu0 %v170
    %v481 = vpop.f32.mrb[0].mxu0
    %v482 = vadd.f32 0.0, %v481
    %v483 = vpop.f32.mrb[0].mxu0
    %484 = vmatprep.mubr.f32.mxu0 0.0
    %485 = vmatmul.mubr.f32.gmra.mrb[0].mxu0 %v173
    %v486 = vpop.f32.mrb[0].mxu0
    %v487 = vadd.f32 0.0, %v486
    %v488 = vpop.f32.mrb[0].mxu0
    %489 = vmatprep.mubr.f32.mxu0 0.0
    %490 = vmatmul.mubr.f32.gmra.mrb[0].mxu0 %v176
    %v491 = vpop.f32.mrb[0].mxu0
    %v492 = vadd.f32 0.0, %v491
    %v493 = vpop.f32.mrb[0].mxu0
    %494 = vmatprep.mubr.f32.mxu0 0.0
    %495 = vmatmul.mubr.f32.gmra.mrb[0].mxu0 %v179
    %v496 = vpop.f32.mrb[0].mxu0
    %v497 = vadd.f32 0.0, %v496
    %v498 = vpop.f32.mrb[0].mxu0
    %499 = vmatprep.mubr.f32.mxu0 0.0
    %500 = vmatmul.mubr.f32.gmra.mrb[0].mxu0 %v182
    %v501 = vpop.f32.mrb[0].mxu0
    %v502 = vadd.f32 0.0, %v501
    %v503 = vpop.f32.mrb[0].mxu0
    %504 = vmatprep.mubr.f32.mxu0 0.0
    %505 = vmatmul.mubr.f32.gmra.mrb[0].mxu0 %v185
    %v506 = vpop.f32.mrb[0].mxu0
    %v507 = vadd.f32 0.0, %v506
    %v508 = vpop.f32.mrb[0].mxu0
    %509 = vmatprep.mubr.f32.mxu0 0.0
    %510 = vmatmul.mubr.f32.gmra.mrb[0].mxu0 %v188
    %v511 = vpop.f32.mrb[0].mxu0
    %v512 = vadd.f32 0.0, %v511
    %v513 = vpop.f32.mrb[0].mxu0
    %514 = vmatprep.mubr.f32.mxu0 0.0
    %515 = vmatmul.mubr.f32.gmra.mrb[0].mxu0 %v191
    %v516 = vpop.f32.mrb[0].mxu0
    %v517 = vadd.f32 0.0, %v516
    %v518 = vpop.f32.mrb[0].mxu0
    %519 = vmatprep.mubr.f32.mxu0 0.0
    %520 = vmatmul.mubr.f32.gmra.mrb[0].mxu0 %v194
    %v521 = vpop.f32.mrb[0].mxu0
    %v522 = vadd.f32 0.0, %v521
    %v523 = vpop.f32.mrb[0].mxu0
    %524 = vmatprep.mubr.f32.mxu0 0.0
    %525 = vmatmul.mubr.f32.gmra.mrb[0].mxu0 %v197
    %v526 = vpop.f32.mrb[0].mxu0
    %v527 = vadd.f32 0.0, %v526
    %v528 = vpop.f32.mrb[0].mxu0
    %529 = vmatprep.mubr.f32.mxu0 0.0
    %530 = vmatmul.mubr.f32.gmra.mrb[0].mxu0 %v200
    %v531 = vpop.f32.mrb[0].mxu0
    %v532 = vadd.f32 0.0, %v531
    %v533 = vpop.f32.mrb[0].mxu0
    %534 = vmatprep.mubr.f32.mxu0 0.0
    %535 = vmatmul.mubr.f32.gmra.mrb[0].mxu0 %v203
    %v536 = vpop.f32.mrb[0].mxu0
    %v537 = vadd.f32 0.0, %v536
    %v538 = vpop.f32.mrb[0].mxu0
    %539 = vmatprep.mubr.f32.mxu0 0.0
    %540 = vmatmul.mubr.f32.gmra.mrb[0].mxu0 %v206
    %v541 = vpop.f32.mrb[0].mxu0
    %v542 = vadd.f32 0.0, %v541
    %v543 = vpop.f32.mrb[0].mxu0
    %544 = vmatprep.mubr.f32.mxu0 0.0
    %545 = vmatmul.mubr.f32.gmra.mrb[0].mxu0 %v209
    %v546 = vpop.f32.mrb[0].mxu0
    %v547 = vadd.f32 0.0, %v546
    %v548 = vpop.f32.mrb[0].mxu0
    %549 = vmatprep.mubr.f32.mxu0 0.0
    %550 = vmatmul.mubr.f32.gmra.mrb[0].mxu0 %v212
    %v551 = vpop.f32.mrb[0].mxu0
    %v552 = vadd.f32 0.0, %v551
    %v553 = vpop.f32.mrb[0].mxu0
    %554 = vmatprep.mubr.f32.mxu0 0.0
    %555 = vmatmul.mubr.f32.gmra.mrb[0].mxu0 %v215
    %v556 = vpop.f32.mrb[0].mxu0
    %v557 = vadd.f32 0.0, %v556
    %v558 = vpop.f32.mrb[0].mxu0
    %559 = vmatprep.mubr.f32.mxu0 0.0
    %560 = vmatmul.mubr.f32.gmra.mrb[0].mxu0 %v218
    %v561 = vpop.f32.mrb[0].mxu0
    %v562 = vadd.f32 0.0, %v561
    %v563 = vpop.f32.mrb[0].mxu0
    %564 = vmatprep.mubr.f32.mxu0 0.0
    %565 = vmatmul.mubr.f32.gmra.mrb[0].mxu0 %v221
    %v566 = vpop.f32.mrb[0].mxu0
    %v567 = vadd.f32 0.0, %v566
    %v568 = vpop.f32.mrb[0].mxu0
    %569 = vmatprep.mubr.f32.mxu0 0.0
    %570 = vmatmul.mubr.f32.gmra.mrb[0].mxu0 %v224
    %v571 = vpop.f32.mrb[0].mxu0
    %v572 = vadd.f32 0.0, %v571
    %v573 = vpop.f32.mrb[0].mxu0
    %574 = vmatprep.mubr.f32.mxu0 0.0
    %575 = vmatmul.mubr.f32.gmra.mrb[0].mxu0 %v227
    %v576 = vpop.f32.mrb[0].mxu0
    %v577 = vadd.f32 0.0, %v576
    %v578 = vpop.f32.mrb[0].mxu0
    %579 = vmatprep.mubr.f32.mxu0 0.0
    %580 = vmatmul.mubr.f32.gmra.mrb[0].mxu0 %v230
    %v581 = vpop.f32.mrb[0].mxu0
    %v582 = vadd.f32 0.0, %v581
    %v583 = vpop.f32.mrb[0].mxu0
    %584 = vmatprep.mubr.f32.mxu0 0.0
    %585 = vmatmul.mubr.f32.gmra.mrb[0].mxu0 %v233
    %v586 = vpop.f32.mrb[0].mxu0
    %v587 = vadd.f32 0.0, %v586
    %v588 = vpop.f32.mrb[0].mxu0
    %589 = vmatprep.mubr.f32.mxu0 0.0
    %590 = vmatmul.mubr.f32.gmra.mrb[0].mxu0 %v236
    %v591 = vpop.f32.mrb[0].mxu0
    %v592 = vadd.f32 0.0, %v591
    %v593 = vpop.f32.mrb[0].mxu0
    %594 = vmatprep.mubr.f32.mxu0 0.0
    %595 = vmatmul.mubr.f32.gmra.mrb[0].mxu0 %v239
    %v596 = vpop.f32.mrb[0].mxu0
    %v597 = vadd.f32 0.0, %v596
    %v598 = vpop.f32.mrb[0].mxu0
    %599 = vmatprep.mubr.f32.mxu0 0.0
    %600 = vmatmul.mubr.f32.gmra.mrb[0].mxu0 %v242
    %v601 = vpop.f32.mrb[0].mxu0
    %v602 = vadd.f32 0.0, %v601
    %v603 = vpop.f32.mrb[0].mxu0
    %604 = vmatprep.mubr.f32.mxu0 0.0
    %605 = vmatmul.mubr.f32.gmra.mrb[0].mxu0 %v245
    %v606 = vpop.f32.mrb[0].mxu0
    %v607 = vadd.f32 0.0, %v606
    %v608 = vpop.f32.mrb[0].mxu0
    %609 = vmatprep.mubr.f32.mxu0 0.0
    %610 = vmatmul.mubr.f32.gmra.mrb[0].mxu0 %v248
    %v611 = vpop.f32.mrb[0].mxu0
    %v612 = vadd.f32 0.0, %v611
    %v613 = vpop.f32.mrb[0].mxu0
    %614 = vmatprep.mubr.f32.mxu0 0.0
    %615 = vmatmul.mubr.f32.gmra.mrb[0].mxu0 %v251
    %v616 = vpop.f32.mrb[0].mxu0
    %v617 = vadd.f32 0.0, %v616
    %v618 = vpop.f32.mrb[0].mxu0
    %619 = vmatprep.mubr.f32.mxu0 0.0
    %620 = vmatmul.mubr.f32.gmra.mrb[0].mxu0 %v254
    %v621 = vpop.f32.mrb[0].mxu0
    %v622 = vadd.f32 0.0, %v621
    %v623 = vpop.f32.mrb[0].mxu0
    %624 = vmatprep.mubr.f32.mxu0 0.0
    %625 = vmatmul.mubr.f32.gmra.mrb[0].mxu0 %v257
    %v626 = vpop.f32.mrb[0].mxu0
    %v627 = vadd.f32 0.0, %v626
    %v628 = vpop.f32.mrb[0].mxu0
    %629 = vmatprep.mubr.f32.mxu0 0.0
    %630 = vmatmul.mubr.f32.gmra.mrb[0].mxu0 %v260
    %v631 = vpop.f32.mrb[0].mxu0
    %v632 = vadd.f32 0.0, %v631
    %v633 = vpop.f32.mrb[0].mxu0
    %634 = vmatprep.mubr.f32.mxu0 0.0
    %635 = vmatmul.mubr.f32.gmra.mrb[0].mxu0 %v263
    %v636 = vpop.f32.mrb[0].mxu0
    %v637 = vadd.f32 0.0, %v636
    %v638 = vpop.f32.mrb[0].mxu0
    %639 = vmatprep.mubr.f32.mxu0 0.0
    %640 = vmatmul.mubr.f32.gmra.mrb[0].mxu0 %v266
    %v641 = vpop.f32.mrb[0].mxu0
    %v642 = vadd.f32 0.0, %v641
    %v643 = vpop.f32.mrb[0].mxu0
    %644 = vmatprep.mubr.f32.mxu0 0.0
    %645 = vmatmul.mubr.f32.gmra.mrb[0].mxu0 %v269
    %v646 = vpop.f32.mrb[0].mxu0
    %v647 = vadd.f32 0.0, %v646
    %v648 = vpop.f32.mrb[0].mxu0
    %649 = vmatprep.mubr.f32.mxu0 0.0
    %650 = vmatmul.mubr.f32.gmra.mrb[0].mxu0 %v272
    %v651 = vpop.f32.mrb[0].mxu0
    %v652 = vadd.f32 0.0, %v651
    %v653 = vpop.f32.mrb[0].mxu0
    %654 = vmatprep.mubr.f32.mxu0 0.0
    %655 = vmatmul.mubr.f32.gmra.mrb[0].mxu0 %v275
    %v656 = vpop.f32.mrb[0].mxu0
    %v657 = vadd.f32 0.0, %v656
    %v658 = vpop.f32.mrb[0].mxu0
    %659 = vmatprep.mubr.f32.mxu0 0.0
    %660 = vmatmul.mubr.f32.gmra.mrb[0].mxu0 %v278
    %v661 = vpop.f32.mrb[0].mxu0
    %v662 = vadd.f32 0.0, %v661
    %v663 = vpop.f32.mrb[0].mxu0
    %664 = vdwg.mxu0
    %v665 = vpack.c.bf16 %v352, %v347
    %v666 = vpack.c.bf16 %v362, %v357
    %v667 = vpack.c.bf16 %v372, %v367
    %v668 = vpack.c.bf16 %v382, %v377
    %v669 = vpack.c.bf16 %v392, %v387
    %v670 = vpack.c.bf16 %v402, %v397
    %v671 = vpack.c.bf16 %v412, %v407
    %v672 = vpack.c.bf16 %v422, %v417
    %v673 = vpack.c.bf16 %v432, %v427
    %v674 = vpack.c.bf16 %v442, %v437
    %v675 = vpack.c.bf16 %v452, %v447
    %v676 = vpack.c.bf16 %v462, %v457
    %v677 = vpack.c.bf16 %v472, %v467
    %v678 = vpack.c.bf16 %v482, %v477
    %v679 = vpack.c.bf16 %v492, %v487
    %v680 = vpack.c.bf16 %v502, %v497
    %v681 = vpack.c.bf16 %v512, %v507
    %v682 = vpack.c.bf16 %v522, %v517
    %v683 = vpack.c.bf16 %v532, %v527
    %v684 = vpack.c.bf16 %v542, %v537
    %v685 = vpack.c.bf16 %v552, %v547
    %v686 = vpack.c.bf16 %v562, %v557
    %v687 = vpack.c.bf16 %v572, %v567
    %v688 = vpack.c.bf16 %v582, %v577
    %v689 = vpack.c.bf16 %v592, %v587
    %v690 = vpack.c.bf16 %v602, %v597
    %v691 = vpack.c.bf16 %v612, %v607
    %v692 = vpack.c.bf16 %v622, %v617
    %v693 = vpack.c.bf16 %v632, %v627
    %v694 = vpack.c.bf16 %v642, %v637
    %v695 = vpack.c.bf16 %v652, %v647
    %v696 = vpack.c.bf16 %v662, %v657
    %v697 = vunpack.c.l.bf16 %v665
    %v698 = vunpack.c.h.bf16 %v665
    %v699 = vunpack.c.l.bf16 %v666
    %v700 = vunpack.c.h.bf16 %v666
    %v701 = vunpack.c.l.bf16 %v667
    %v702 = vunpack.c.h.bf16 %v667
    %v703 = vunpack.c.l.bf16 %v668
    %v704 = vunpack.c.h.bf16 %v668
    %v705 = vunpack.c.l.bf16 %v669
    %v706 = vunpack.c.h.bf16 %v669
    %v707 = vunpack.c.l.bf16 %v670
    %v708 = vunpack.c.h.bf16 %v670
    %v709 = vunpack.c.l.bf16 %v671
    %v710 = vunpack.c.h.bf16 %v671
    %v711 = vunpack.c.l.bf16 %v672
    %v712 = vunpack.c.h.bf16 %v672
    %v713 = vunpack.c.l.bf16 %v673
    %v714 = vunpack.c.h.bf16 %v673
    %v715 = vunpack.c.l.bf16 %v674
    %v716 = vunpack.c.h.bf16 %v674
    %v717 = vunpack.c.l.bf16 %v675
    %v718 = vunpack.c.h.bf16 %v675
    %v719 = vunpack.c.l.bf16 %v676
    %v720 = vunpack.c.h.bf16 %v676
    %v721 = vunpack.c.l.bf16 %v677
    %v722 = vunpack.c.h.bf16 %v677
    %v723 = vunpack.c.l.bf16 %v678
    %v724 = vunpack.c.h.bf16 %v678
    %v725 = vunpack.c.l.bf16 %v679
    %v726 = vunpack.c.h.bf16 %v679
    %v727 = vunpack.c.l.bf16 %v680
    %v728 = vunpack.c.h.bf16 %v680
    %v729 = vunpack.c.l.bf16 %v681
    %v730 = vunpack.c.h.bf16 %v681
    %v731 = vunpack.c.l.bf16 %v682
    %v732 = vunpack.c.h.bf16 %v682
    %v733 = vunpack.c.l.bf16 %v683
    %v734 = vunpack.c.h.bf16 %v683
    %v735 = vunpack.c.l.bf16 %v684
    %v736 = vunpack.c.h.bf16 %v684
    %v737 = vunpack.c.l.bf16 %v685
    %v738 = vunpack.c.h.bf16 %v685
    %v739 = vunpack.c.l.bf16 %v686
    %v740 = vunpack.c.h.bf16 %v686
    %v741 = vunpack.c.l.bf16 %v687
    %v742 = vunpack.c.h.bf16 %v687
    %v743 = vunpack.c.l.bf16 %v688
    %v744 = vunpack.c.h.bf16 %v688
    %v745 = vunpack.c.l.bf16 %v689
    %v746 = vunpack.c.h.bf16 %v689
    %v747 = vunpack.c.l.bf16 %v690
    %v748 = vunpack.c.h.bf16 %v690
    %v749 = vunpack.c.l.bf16 %v691
    %v750 = vunpack.c.h.bf16 %v691
    %v751 = vunpack.c.l.bf16 %v692
    %v752 = vunpack.c.h.bf16 %v692
    %v753 = vunpack.c.l.bf16 %v693
    %v754 = vunpack.c.h.bf16 %v693
    %v755 = vunpack.c.l.bf16 %v694
    %v756 = vunpack.c.h.bf16 %v694
    %v757 = vunpack.c.l.bf16 %v695
    %v758 = vunpack.c.h.bf16 %v695
    %v759 = vunpack.c.l.bf16 %v696
    %v760 = vunpack.c.h.bf16 %v696
    %v761 = vsub.f32 %v347, %v697
    %v762 = vsub.f32 %v352, %v698
    %v763 = vsub.f32 %v357, %v699
    %v764 = vsub.f32 %v362, %v700
    %v765 = vsub.f32 %v367, %v701
    %v766 = vsub.f32 %v372, %v702
    %v767 = vsub.f32 %v377, %v703
    %v768 = vsub.f32 %v382, %v704
    %v769 = vsub.f32 %v387, %v705
    %v770 = vsub.f32 %v392, %v706
    %v771 = vsub.f32 %v397, %v707
    %v772 = vsub.f32 %v402, %v708
    %v773 = vsub.f32 %v407, %v709
    %v774 = vsub.f32 %v412, %v710
    %v775 = vsub.f32 %v417, %v711
    %v776 = vsub.f32 %v422, %v712
    %v777 = vsub.f32 %v427, %v713
    %v778 = vsub.f32 %v432, %v714
    %v779 = vsub.f32 %v437, %v715
    %v780 = vsub.f32 %v442, %v716
    %v781 = vsub.f32 %v447, %v717
    %v782 = vsub.f32 %v452, %v718
    %v783 = vsub.f32 %v457, %v719
    %v784 = vsub.f32 %v462, %v720
    %v785 = vsub.f32 %v467, %v721
    %v786 = vsub.f32 %v472, %v722
    %v787 = vsub.f32 %v477, %v723
    %v788 = vsub.f32 %v482, %v724
    %v789 = vsub.f32 %v487, %v725
    %v790 = vsub.f32 %v492, %v726
    %v791 = vsub.f32 %v497, %v727
    %v792 = vsub.f32 %v502, %v728
    %v793 = vsub.f32 %v507, %v729
    %v794 = vsub.f32 %v512, %v730
    %v795 = vsub.f32 %v517, %v731
    %v796 = vsub.f32 %v522, %v732
    %v797 = vsub.f32 %v527, %v733
    %v798 = vsub.f32 %v532, %v734
    %v799 = vsub.f32 %v537, %v735
    %v800 = vsub.f32 %v542, %v736
    %v801 = vsub.f32 %v547, %v737
    %v802 = vsub.f32 %v552, %v738
    %v803 = vsub.f32 %v557, %v739
    %v804 = vsub.f32 %v562, %v740
    %v805 = vsub.f32 %v567, %v741
    %v806 = vsub.f32 %v572, %v742
    %v807 = vsub.f32 %v577, %v743
    %v808 = vsub.f32 %v582, %v744
    %v809 = vsub.f32 %v587, %v745
    %v810 = vsub.f32 %v592, %v746
    %v811 = vsub.f32 %v597, %v747
    %v812 = vsub.f32 %v602, %v748
    %v813 = vsub.f32 %v607, %v749
    %v814 = vsub.f32 %v612, %v750
    %v815 = vsub.f32 %v617, %v751
    %v816 = vsub.f32 %v622, %v752
    %v817 = vsub.f32 %v627, %v753
    %v818 = vsub.f32 %v632, %v754
    %v819 = vsub.f32 %v637, %v755
    %v820 = vsub.f32 %v642, %v756
    %v821 = vsub.f32 %v647, %v757
    %v822 = vsub.f32 %v652, %v758
    %v823 = vsub.f32 %v657, %v759
    %v824 = vsub.f32 %v662, %v760
    %v825 = vpack.c.bf16 %v762, %v761
    %v826 = vpack.c.bf16 %v764, %v763
    %v827 = vpack.c.bf16 %v766, %v765
    %v828 = vpack.c.bf16 %v768, %v767
    %v829 = vpack.c.bf16 %v770, %v769
    %v830 = vpack.c.bf16 %v772, %v771
    %v831 = vpack.c.bf16 %v774, %v773
    %v832 = vpack.c.bf16 %v776, %v775
    %v833 = vpack.c.bf16 %v778, %v777
    %v834 = vpack.c.bf16 %v780, %v779
    %v835 = vpack.c.bf16 %v782, %v781
    %v836 = vpack.c.bf16 %v784, %v783
    %v837 = vpack.c.bf16 %v786, %v785
    %v838 = vpack.c.bf16 %v788, %v787
    %v839 = vpack.c.bf16 %v790, %v789
    %v840 = vpack.c.bf16 %v792, %v791
    %v841 = vpack.c.bf16 %v794, %v793
    %v842 = vpack.c.bf16 %v796, %v795
    %v843 = vpack.c.bf16 %v798, %v797
    %v844 = vpack.c.bf16 %v800, %v799
    %v845 = vpack.c.bf16 %v802, %v801
    %v846 = vpack.c.bf16 %v804, %v803
    %v847 = vpack.c.bf16 %v806, %v805
    %v848 = vpack.c.bf16 %v808, %v807
    %v849 = vpack.c.bf16 %v810, %v809
    %v850 = vpack.c.bf16 %v812, %v811
    %v851 = vpack.c.bf16 %v814, %v813
    %v852 = vpack.c.bf16 %v816, %v815
    %v853 = vpack.c.bf16 %v818, %v817
    %v854 = vpack.c.bf16 %v820, %v819
    %v855 = vpack.c.bf16 %v822, %v821
    %v856 = vpack.c.bf16 %v824, %v823
    %v889 = vunpack.c.l.b16 %v665
    %v890 = vunpack.c.h.b16 %v665
    %v891 = vunpack.c.l.b16 %v666
    %v892 = vunpack.c.h.b16 %v666
    %v893 = vunpack.c.l.b16 %v667
    %v894 = vunpack.c.h.b16 %v667
    %v895 = vunpack.c.l.b16 %v668
    %v896 = vunpack.c.h.b16 %v668
    %v897 = vunpack.c.l.b16 %v669
    %v898 = vunpack.c.h.b16 %v669
    %v899 = vunpack.c.l.b16 %v670
    %v900 = vunpack.c.h.b16 %v670
    %v901 = vunpack.c.l.b16 %v671
    %v902 = vunpack.c.h.b16 %v671
    %v903 = vunpack.c.l.b16 %v672
    %v904 = vunpack.c.h.b16 %v672
    %v905 = vunpack.c.l.b16 %v673
    %v906 = vunpack.c.h.b16 %v673
    %v907 = vunpack.c.l.b16 %v674
    %v908 = vunpack.c.h.b16 %v674
    %v909 = vunpack.c.l.b16 %v675
    %v910 = vunpack.c.h.b16 %v675
    %v911 = vunpack.c.l.b16 %v676
    %v912 = vunpack.c.h.b16 %v676
    %v913 = vunpack.c.l.b16 %v677
    %v914 = vunpack.c.h.b16 %v677
    %v915 = vunpack.c.l.b16 %v678
    %v916 = vunpack.c.h.b16 %v678
    %v917 = vunpack.c.l.b16 %v679
    %v918 = vunpack.c.h.b16 %v679
    %v919 = vunpack.c.l.b16 %v680
    %v920 = vunpack.c.h.b16 %v680
    %v921 = vunpack.c.l.b16 %v681
    %v922 = vunpack.c.h.b16 %v681
    %v923 = vunpack.c.l.b16 %v682
    %v924 = vunpack.c.h.b16 %v682
    %v925 = vunpack.c.l.b16 %v683
    %v926 = vunpack.c.h.b16 %v683
    %v927 = vunpack.c.l.b16 %v684
    %v928 = vunpack.c.h.b16 %v684
    %v929 = vunpack.c.l.b16 %v685
    %v930 = vunpack.c.h.b16 %v685
    %v931 = vunpack.c.l.b16 %v686
    %v932 = vunpack.c.h.b16 %v686
    %v933 = vunpack.c.l.b16 %v687
    %v934 = vunpack.c.h.b16 %v687
    %v935 = vunpack.c.l.b16 %v688
    %v936 = vunpack.c.h.b16 %v688
    %v937 = vunpack.c.l.b16 %v689
    %v938 = vunpack.c.h.b16 %v689
    %v939 = vunpack.c.l.b16 %v690
    %v940 = vunpack.c.h.b16 %v690
    %v941 = vunpack.c.l.b16 %v691
    %v942 = vunpack.c.h.b16 %v691
    %v943 = vunpack.c.l.b16 %v692
    %v944 = vunpack.c.h.b16 %v692
    %v945 = vunpack.c.l.b16 %v693
    %v946 = vunpack.c.h.b16 %v693
    %v947 = vunpack.c.l.b16 %v694
    %v948 = vunpack.c.h.b16 %v694
    %v949 = vunpack.c.l.b16 %v695
    %v950 = vunpack.c.h.b16 %v695
    %v951 = vunpack.c.l.b16 %v696
    %v952 = vunpack.c.h.b16 %v696
    %v953 = vpack.c.b16 %v889, %v889
    %v954 = vpack.c.b16 %v890, %v890
    %v955 = vpack.c.b16 %v891, %v891
    %v956 = vpack.c.b16 %v892, %v892
    %v957 = vpack.c.b16 %v893, %v893
    %v958 = vpack.c.b16 %v894, %v894
    %v959 = vpack.c.b16 %v895, %v895
    %v960 = vpack.c.b16 %v896, %v896
    %v961 = vpack.c.b16 %v897, %v897
    %v962 = vpack.c.b16 %v898, %v898
    %v963 = vpack.c.b16 %v899, %v899
    %v964 = vpack.c.b16 %v900, %v900
    %v965 = vpack.c.b16 %v901, %v901
    %v966 = vpack.c.b16 %v902, %v902
    %v967 = vpack.c.b16 %v903, %v903
    %v968 = vpack.c.b16 %v904, %v904
    %v969 = vpack.c.b16 %v905, %v905
    %v970 = vpack.c.b16 %v906, %v906
    %v971 = vpack.c.b16 %v907, %v907
    %v972 = vpack.c.b16 %v908, %v908
    %v973 = vpack.c.b16 %v909, %v909
    %v974 = vpack.c.b16 %v910, %v910
    %v975 = vpack.c.b16 %v911, %v911
    %v976 = vpack.c.b16 %v912, %v912
    %v977 = vpack.c.b16 %v913, %v913
    %v978 = vpack.c.b16 %v914, %v914
    %v979 = vpack.c.b16 %v915, %v915
    %v980 = vpack.c.b16 %v916, %v916
    %v981 = vpack.c.b16 %v917, %v917
    %v982 = vpack.c.b16 %v918, %v918
    %v983 = vpack.c.b16 %v919, %v919
    %v984 = vpack.c.b16 %v920, %v920
    %v985 = vpack.c.b16 %v921, %v921
    %v986 = vpack.c.b16 %v922, %v922
    %v987 = vpack.c.b16 %v923, %v923
    %v988 = vpack.c.b16 %v924, %v924
    %v989 = vpack.c.b16 %v925, %v925
    %v990 = vpack.c.b16 %v926, %v926
    %v991 = vpack.c.b16 %v927, %v927
    %v992 = vpack.c.b16 %v928, %v928
    %v993 = vpack.c.b16 %v929, %v929
    %v994 = vpack.c.b16 %v930, %v930
    %v995 = vpack.c.b16 %v931, %v931
    %v996 = vpack.c.b16 %v932, %v932
    %v997 = vpack.c.b16 %v933, %v933
    %v998 = vpack.c.b16 %v934, %v934
    %v999 = vpack.c.b16 %v935, %v935
    %v1000 = vpack.c.b16 %v936, %v936
    %v1001 = vpack.c.b16 %v937, %v937
    %v1002 = vpack.c.b16 %v938, %v938
    %v1003 = vpack.c.b16 %v939, %v939
    %v1004 = vpack.c.b16 %v940, %v940
    %v1005 = vpack.c.b16 %v941, %v941
    %v1006 = vpack.c.b16 %v942, %v942
    %v1007 = vpack.c.b16 %v943, %v943
    %v1008 = vpack.c.b16 %v944, %v944
    %v1009 = vpack.c.b16 %v945, %v945
    %v1010 = vpack.c.b16 %v946, %v946
    %v1011 = vpack.c.b16 %v947, %v947
    %v1012 = vpack.c.b16 %v948, %v948
    %v1013 = vpack.c.b16 %v949, %v949
    %v1014 = vpack.c.b16 %v950, %v950
    %v1015 = vpack.c.b16 %v951, %v951
    %v1016 = vpack.c.b16 %v952, %v952
    %1081 = vst [vmem:[#allocation2] sm:$0xf] %v953
    %1082 = vst [vmem:[#allocation2 + $0x4] sm:$0xf] %v954
    %1083 = vst [vmem:[#allocation2 + $0x8] sm:$0xf] %v955
    %1084 = vst [vmem:[#allocation2 + $0xc] sm:$0xf] %v956
    %1085 = vst [vmem:[#allocation2 + $0x10] sm:$0xf] %v957
    %1086 = vst [vmem:[#allocation2 + $0x14] sm:$0xf] %v958
    %1087 = vst [vmem:[#allocation2 + $0x18] sm:$0xf] %v959
    %1088 = vst [vmem:[#allocation2 + $0x1c] sm:$0xf] %v960
    %1089 = vst [vmem:[#allocation2 + $0x20] sm:$0xf] %v961
    %1090 = vst [vmem:[#allocation2 + $0x24] sm:$0xf] %v962
    %1091 = vst [vmem:[#allocation2 + $0x28] sm:$0xf] %v963
    %1092 = vst [vmem:[#allocation2 + $0x2c] sm:$0xf] %v964
    %1093 = vst [vmem:[#allocation2 + $0x30] sm:$0xf] %v965
    %1094 = vst [vmem:[#allocation2 + $0x34] sm:$0xf] %v966
    %1095 = vst [vmem:[#allocation2 + $0x38] sm:$0xf] %v967
    %1096 = vst [vmem:[#allocation2 + $0x3c] sm:$0xf] %v968
    %1097 = vst [vmem:[#allocation2 + $0x40] sm:$0xf] %v969
    %1098 = vst [vmem:[#allocation2 + $0x44] sm:$0xf] %v970
    %1099 = vst [vmem:[#allocation2 + $0x48] sm:$0xf] %v971
    %1100 = vst [vmem:[#allocation2 + $0x4c] sm:$0xf] %v972
    %1101 = vst [vmem:[#allocation2 + $0x50] sm:$0xf] %v973
    %1102 = vst [vmem:[#allocation2 + $0x54] sm:$0xf] %v974
    %1103 = vst [vmem:[#allocation2 + $0x58] sm:$0xf] %v975
    %1104 = vst [vmem:[#allocation2 + $0x5c] sm:$0xf] %v976
    %1105 = vst [vmem:[#allocation2 + $0x60] sm:$0xf] %v977
    %1106 = vst [vmem:[#allocation2 + $0x64] sm:$0xf] %v978
    %1107 = vst [vmem:[#allocation2 + $0x68] sm:$0xf] %v979
    %1108 = vst [vmem:[#allocation2 + $0x6c] sm:$0xf] %v980
    %1109 = vst [vmem:[#allocation2 + $0x70] sm:$0xf] %v981
    %1110 = vst [vmem:[#allocation2 + $0x74] sm:$0xf] %v982
    %1111 = vst [vmem:[#allocation2 + $0x78] sm:$0xf] %v983
    %1112 = vst [vmem:[#allocation2 + $0x7c] sm:$0xf] %v984
    %1113 = vst [vmem:[#allocation2 + $0x80] sm:$0xf] %v985
    %1114 = vst [vmem:[#allocation2 + $0x84] sm:$0xf] %v986
    %1115 = vst [vmem:[#allocation2 + $0x88] sm:$0xf] %v987
    %1116 = vst [vmem:[#allocation2 + $0x8c] sm:$0xf] %v988
    %1117 = vst [vmem:[#allocation2 + $0x90] sm:$0xf] %v989
    %1118 = vst [vmem:[#allocation2 + $0x94] sm:$0xf] %v990
    %1119 = vst [vmem:[#allocation2 + $0x98] sm:$0xf] %v991
    %1120 = vst [vmem:[#allocation2 + $0x9c] sm:$0xf] %v992
    %1121 = vst [vmem:[#allocation2 + $0xa0] sm:$0xf] %v993
    %1122 = vst [vmem:[#allocation2 + $0xa4] sm:$0xf] %v994
    %1123 = vst [vmem:[#allocation2 + $0xa8] sm:$0xf] %v995
    %1124 = vst [vmem:[#allocation2 + $0xac] sm:$0xf] %v996
    %1125 = vst [vmem:[#allocation2 + $0xb0] sm:$0xf] %v997
    %1126 = vst [vmem:[#allocation2 + $0xb4] sm:$0xf] %v998
    %1127 = vst [vmem:[#allocation2 + $0xb8] sm:$0xf] %v999
    %1128 = vst [vmem:[#allocation2 + $0xbc] sm:$0xf] %v1000
    %1129 = vst [vmem:[#allocation2 + $0xc0] sm:$0xf] %v1001
    %1130 = vst [vmem:[#allocation2 + $0xc4] sm:$0xf] %v1002
    %1131 = vst [vmem:[#allocation2 + $0xc8] sm:$0xf] %v1003
    %1132 = vst [vmem:[#allocation2 + $0xcc] sm:$0xf] %v1004
    %1133 = vst [vmem:[#allocation2 + $0xd0] sm:$0xf] %v1005
    %1134 = vst [vmem:[#allocation2 + $0xd4] sm:$0xf] %v1006
    %1135 = vst [vmem:[#allocation2 + $0xd8] sm:$0xf] %v1007
    %1136 = vst [vmem:[#allocation2 + $0xdc] sm:$0xf] %v1008
    %1137 = vst [vmem:[#allocation2 + $0xe0] sm:$0xf] %v1009
    %1138 = vst [vmem:[#allocation2 + $0xe4] sm:$0xf] %v1010
    %1139 = vst [vmem:[#allocation2 + $0xe8] sm:$0xf] %v1011
    %1140 = vst [vmem:[#allocation2 + $0xec] sm:$0xf] %v1012
    %1141 = vst [vmem:[#allocation2 + $0xf0] sm:$0xf] %v1013
    %1142 = vst [vmem:[#allocation2 + $0xf4] sm:$0xf] %v1014
    %1143 = vst [vmem:[#allocation2 + $0xf8] sm:$0xf] %v1015
    %1144 = vst [vmem:[#allocation2 + $0xfc] sm:$0xf] %v1016
    %v1177 = vunpack.c.l.b16 %v825
    %v1178 = vunpack.c.h.b16 %v825
    %v1179 = vunpack.c.l.b16 %v826
    %v1180 = vunpack.c.h.b16 %v826
    %v1181 = vunpack.c.l.b16 %v827
    %v1182 = vunpack.c.h.b16 %v827
    %v1183 = vunpack.c.l.b16 %v828
    %v1184 = vunpack.c.h.b16 %v828
    %v1185 = vunpack.c.l.b16 %v829
    %v1186 = vunpack.c.h.b16 %v829
    %v1187 = vunpack.c.l.b16 %v830
    %v1188 = vunpack.c.h.b16 %v830
    %v1189 = vunpack.c.l.b16 %v831
    %v1190 = vunpack.c.h.b16 %v831
    %v1191 = vunpack.c.l.b16 %v832
    %v1192 = vunpack.c.h.b16 %v832
    %v1193 = vunpack.c.l.b16 %v833
    %v1194 = vunpack.c.h.b16 %v833
    %v1195 = vunpack.c.l.b16 %v834
    %v1196 = vunpack.c.h.b16 %v834
    %v1197 = vunpack.c.l.b16 %v835
    %v1198 = vunpack.c.h.b16 %v835
    %v1199 = vunpack.c.l.b16 %v836
    %v1200 = vunpack.c.h.b16 %v836
    %v1201 = vunpack.c.l.b16 %v837
    %v1202 = vunpack.c.h.b16 %v837
    %v1203 = vunpack.c.l.b16 %v838
    %v1204 = vunpack.c.h.b16 %v838
    %v1205 = vunpack.c.l.b16 %v839
    %v1206 = vunpack.c.h.b16 %v839
    %v1207 = vunpack.c.l.b16 %v840
    %v1208 = vunpack.c.h.b16 %v840
    %v1209 = vunpack.c.l.b16 %v841
    %v1210 = vunpack.c.h.b16 %v841
    %v1211 = vunpack.c.l.b16 %v842
    %v1212 = vunpack.c.h.b16 %v842
    %v1213 = vunpack.c.l.b16 %v843
    %v1214 = vunpack.c.h.b16 %v843
    %v1215 = vunpack.c.l.b16 %v844
    %v1216 = vunpack.c.h.b16 %v844
    %v1217 = vunpack.c.l.b16 %v845
    %v1218 = vunpack.c.h.b16 %v845
    %v1219 = vunpack.c.l.b16 %v846
    %v1220 = vunpack.c.h.b16 %v846
    %v1221 = vunpack.c.l.b16 %v847
    %v1222 = vunpack.c.h.b16 %v847
    %v1223 = vunpack.c.l.b16 %v848
    %v1224 = vunpack.c.h.b16 %v848
    %v1225 = vunpack.c.l.b16 %v849
    %v1226 = vunpack.c.h.b16 %v849
    %v1227 = vunpack.c.l.b16 %v850
    %v1228 = vunpack.c.h.b16 %v850
    %v1229 = vunpack.c.l.b16 %v851
    %v1230 = vunpack.c.h.b16 %v851
    %v1231 = vunpack.c.l.b16 %v852
    %v1232 = vunpack.c.h.b16 %v852
    %v1233 = vunpack.c.l.b16 %v853
    %v1234 = vunpack.c.h.b16 %v853
    %v1235 = vunpack.c.l.b16 %v854
    %v1236 = vunpack.c.h.b16 %v854
    %v1237 = vunpack.c.l.b16 %v855
    %v1238 = vunpack.c.h.b16 %v855
    %v1239 = vunpack.c.l.b16 %v856
    %v1240 = vunpack.c.h.b16 %v856
    %v1241 = vpack.c.b16 %v1177, %v1177
    %v1242 = vpack.c.b16 %v1178, %v1178
    %v1243 = vpack.c.b16 %v1179, %v1179
    %v1244 = vpack.c.b16 %v1180, %v1180
    %v1245 = vpack.c.b16 %v1181, %v1181
    %v1246 = vpack.c.b16 %v1182, %v1182
    %v1247 = vpack.c.b16 %v1183, %v1183
    %v1248 = vpack.c.b16 %v1184, %v1184
    %v1249 = vpack.c.b16 %v1185, %v1185
    %v1250 = vpack.c.b16 %v1186, %v1186
    %v1251 = vpack.c.b16 %v1187, %v1187
    %v1252 = vpack.c.b16 %v1188, %v1188
    %v1253 = vpack.c.b16 %v1189, %v1189
    %v1254 = vpack.c.b16 %v1190, %v1190
    %v1255 = vpack.c.b16 %v1191, %v1191
    %v1256 = vpack.c.b16 %v1192, %v1192
    %v1257 = vpack.c.b16 %v1193, %v1193
    %v1258 = vpack.c.b16 %v1194, %v1194
    %v1259 = vpack.c.b16 %v1195, %v1195
    %v1260 = vpack.c.b16 %v1196, %v1196
    %v1261 = vpack.c.b16 %v1197, %v1197
    %v1262 = vpack.c.b16 %v1198, %v1198
    %v1263 = vpack.c.b16 %v1199, %v1199
    %v1264 = vpack.c.b16 %v1200, %v1200
    %v1265 = vpack.c.b16 %v1201, %v1201
    %v1266 = vpack.c.b16 %v1202, %v1202
    %v1267 = vpack.c.b16 %v1203, %v1203
    %v1268 = vpack.c.b16 %v1204, %v1204
    %v1269 = vpack.c.b16 %v1205, %v1205
    %v1270 = vpack.c.b16 %v1206, %v1206
    %v1271 = vpack.c.b16 %v1207, %v1207
    %v1272 = vpack.c.b16 %v1208, %v1208
    %v1273 = vpack.c.b16 %v1209, %v1209
    %v1274 = vpack.c.b16 %v1210, %v1210
    %v1275 = vpack.c.b16 %v1211, %v1211
    %v1276 = vpack.c.b16 %v1212, %v1212
    %v1277 = vpack.c.b16 %v1213, %v1213
    %v1278 = vpack.c.b16 %v1214, %v1214
    %v1279 = vpack.c.b16 %v1215, %v1215
    %v1280 = vpack.c.b16 %v1216, %v1216
    %v1281 = vpack.c.b16 %v1217, %v1217
    %v1282 = vpack.c.b16 %v1218, %v1218
    %v1283 = vpack.c.b16 %v1219, %v1219
    %v1284 = vpack.c.b16 %v1220, %v1220
    %v1285 = vpack.c.b16 %v1221, %v1221
    %v1286 = vpack.c.b16 %v1222, %v1222
    %v1287 = vpack.c.b16 %v1223, %v1223
    %v1288 = vpack.c.b16 %v1224, %v1224
    %v1289 = vpack.c.b16 %v1225, %v1225
    %v1290 = vpack.c.b16 %v1226, %v1226
    %v1291 = vpack.c.b16 %v1227, %v1227
    %v1292 = vpack.c.b16 %v1228, %v1228
    %v1293 = vpack.c.b16 %v1229, %v1229
    %v1294 = vpack.c.b16 %v1230, %v1230
    %v1295 = vpack.c.b16 %v1231, %v1231
    %v1296 = vpack.c.b16 %v1232, %v1232
    %v1297 = vpack.c.b16 %v1233, %v1233
    %v1298 = vpack.c.b16 %v1234, %v1234
    %v1299 = vpack.c.b16 %v1235, %v1235
    %v1300 = vpack.c.b16 %v1236, %v1236
    %v1301 = vpack.c.b16 %v1237, %v1237
    %v1302 = vpack.c.b16 %v1238, %v1238
    %v1303 = vpack.c.b16 %v1239, %v1239
    %v1304 = vpack.c.b16 %v1240, %v1240
    %1369 = vst [vmem:[#allocation4] sm:$0xf] %v1241
    %1370 = vst [vmem:[#allocation4 + $0x4] sm:$0xf] %v1242
    %1371 = vst [vmem:[#allocation4 + $0x8] sm:$0xf] %v1243
    %1372 = vst [vmem:[#allocation4 + $0xc] sm:$0xf] %v1244
    %1373 = vst [vmem:[#allocation4 + $0x10] sm:$0xf] %v1245
    %1374 = vst [vmem:[#allocation4 + $0x14] sm:$0xf] %v1246
    %1375 = vst [vmem:[#allocation4 + $0x18] sm:$0xf] %v1247
    %1376 = vst [vmem:[#allocation4 + $0x1c] sm:$0xf] %v1248
    %1377 = vst [vmem:[#allocation4 + $0x20] sm:$0xf] %v1249
    %1378 = vst [vmem:[#allocation4 + $0x24] sm:$0xf] %v1250
    %1379 = vst [vmem:[#allocation4 + $0x28] sm:$0xf] %v1251
    %1380 = vst [vmem:[#allocation4 + $0x2c] sm:$0xf] %v1252
    %1381 = vst [vmem:[#allocation4 + $0x30] sm:$0xf] %v1253
    %1382 = vst [vmem:[#allocation4 + $0x34] sm:$0xf] %v1254
    %1383 = vst [vmem:[#allocation4 + $0x38] sm:$0xf] %v1255
    %1384 = vst [vmem:[#allocation4 + $0x3c] sm:$0xf] %v1256
    %1385 = vst [vmem:[#allocation4 + $0x40] sm:$0xf] %v1257
    %1386 = vst [vmem:[#allocation4 + $0x44] sm:$0xf] %v1258
    %1387 = vst [vmem:[#allocation4 + $0x48] sm:$0xf] %v1259
    %1388 = vst [vmem:[#allocation4 + $0x4c] sm:$0xf] %v1260
    %1389 = vst [vmem:[#allocation4 + $0x50] sm:$0xf] %v1261
    %1390 = vst [vmem:[#allocation4 + $0x54] sm:$0xf] %v1262
    %1391 = vst [vmem:[#allocation4 + $0x58] sm:$0xf] %v1263
    %1392 = vst [vmem:[#allocation4 + $0x5c] sm:$0xf] %v1264
    %1393 = vst [vmem:[#allocation4 + $0x60] sm:$0xf] %v1265
    %1394 = vst [vmem:[#allocation4 + $0x64] sm:$0xf] %v1266
    %1395 = vst [vmem:[#allocation4 + $0x68] sm:$0xf] %v1267
    %1396 = vst [vmem:[#allocation4 + $0x6c] sm:$0xf] %v1268
    %1397 = vst [vmem:[#allocation4 + $0x70] sm:$0xf] %v1269
    %1398 = vst [vmem:[#allocation4 + $0x74] sm:$0xf] %v1270
    %1399 = vst [vmem:[#allocation4 + $0x78] sm:$0xf] %v1271
    %1400 = vst [vmem:[#allocation4 + $0x7c] sm:$0xf] %v1272
    %1401 = vst [vmem:[#allocation4 + $0x80] sm:$0xf] %v1273
    %1402 = vst [vmem:[#allocation4 + $0x84] sm:$0xf] %v1274
    %1403 = vst [vmem:[#allocation4 + $0x88] sm:$0xf] %v1275
    %1404 = vst [vmem:[#allocation4 + $0x8c] sm:$0xf] %v1276
    %1405 = vst [vmem:[#allocation4 + $0x90] sm:$0xf] %v1277
    %1406 = vst [vmem:[#allocation4 + $0x94] sm:$0xf] %v1278
    %1407 = vst [vmem:[#allocation4 + $0x98] sm:$0xf] %v1279
    %1408 = vst [vmem:[#allocation4 + $0x9c] sm:$0xf] %v1280
    %1409 = vst [vmem:[#allocation4 + $0xa0] sm:$0xf] %v1281
    %1410 = vst [vmem:[#allocation4 + $0xa4] sm:$0xf] %v1282
    %1411 = vst [vmem:[#allocation4 + $0xa8] sm:$0xf] %v1283
    %1412 = vst [vmem:[#allocation4 + $0xac] sm:$0xf] %v1284
    %1413 = vst [vmem:[#allocation4 + $0xb0] sm:$0xf] %v1285
    %1414 = vst [vmem:[#allocation4 + $0xb4] sm:$0xf] %v1286
    %1415 = vst [vmem:[#allocation4 + $0xb8] sm:$0xf] %v1287
    %1416 = vst [vmem:[#allocation4 + $0xbc] sm:$0xf] %v1288
    %1417 = vst [vmem:[#allocation4 + $0xc0] sm:$0xf] %v1289
    %1418 = vst [vmem:[#allocation4 + $0xc4] sm:$0xf] %v1290
    %1419 = vst [vmem:[#allocation4 + $0xc8] sm:$0xf] %v1291
    %1420 = vst [vmem:[#allocation4 + $0xcc] sm:$0xf] %v1292
    %1421 = vst [vmem:[#allocation4 + $0xd0] sm:$0xf] %v1293
    %1422 = vst [vmem:[#allocation4 + $0xd4] sm:$0xf] %v1294
    %1423 = vst [vmem:[#allocation4 + $0xd8] sm:$0xf] %v1295
    %1424 = vst [vmem:[#allocation4 + $0xdc] sm:$0xf] %v1296
    %1425 = vst [vmem:[#allocation4 + $0xe0] sm:$0xf] %v1297
    %1426 = vst [vmem:[#allocation4 + $0xe4] sm:$0xf] %v1298
    %1427 = vst [vmem:[#allocation4 + $0xe8] sm:$0xf] %v1299
    %1428 = vst [vmem:[#allocation4 + $0xec] sm:$0xf] %v1300
    %1429 = vst [vmem:[#allocation4 + $0xf0] sm:$0xf] %v1301
    %1430 = vst [vmem:[#allocation4 + $0xf4] sm:$0xf] %v1302
    %1431 = vst [vmem:[#allocation4 + $0xf8] sm:$0xf] %v1303
    %1432 = vst [vmem:[#allocation4 + $0xfc] sm:$0xf] %v1304
    // Predicated region
    $region10: #{tpu_custom_call.1} parent=1 // pred_check
      _
    $region11: #{tpu_custom_call.1} parent=1 // pred_check_branch
      %1434 = sbr.rel (0) target = $region13
    $region12: #{tpu_custom_call.1} parent=1 // pred_region
      %s1436 = ssub.s32 4096, 4096
      %1437 = vsyncadd [#allocation3], %s1436
      %s1438 = sshll.u32 [#allocation2], 4
      %s1439 = int_to_ptr.vmem [resolvable:$true] %s1438
      %1444 = dma.vmem_to_hbm [thread:$0]  %s1439, 4096, %s2, [#allocation3], 64, 64, 4
    $region13: #{tpu_custom_call.1} parent=1 // pred_fallthru
      _
    // Predicated region
    $region14: #{tpu_custom_call.1} parent=1 // pred_check
      _
    $region15: #{tpu_custom_call.1} parent=1 // pred_check_branch
      %1446 = sbr.rel (0) target = $region17
    $region16: #{tpu_custom_call.1} parent=1 // pred_region
      %s1448 = ssub.s32 4096, 4096
      %1449 = vsyncadd [#allocation5], %s1448
      %s1450 = sshll.u32 [#allocation4], 4
      %s1451 = int_to_ptr.vmem [resolvable:$true] %s1450
      %1456 = dma.vmem_to_hbm [thread:$0]  %s1451, 4096, %s3, [#allocation5], 64, 64, 4
    $region17: #{tpu_custom_call.1} parent=1 // pred_fallthru
      _
    // Predicated region
    $region18: #{tpu_custom_call.1} parent=1 // pred_check
      _
    $region19: #{tpu_custom_call.1} parent=1 // pred_check_branch
      %1458 = sbr.rel (0) target = $region21
    $region20: #{tpu_custom_call.1} parent=1 // pred_region
      %1459 = dma.done [#allocation3], 4096
    $region21: #{tpu_custom_call.1} parent=1 // pred_fallthru
      _
    // Predicated region
    $region22: #{tpu_custom_call.1} parent=1 // pred_check
      _
    $region23: #{tpu_custom_call.1} parent=1 // pred_check_branch
      %1461 = sbr.rel (0) target = $region25
    $region24: #{tpu_custom_call.1} parent=1 // pred_region
      %1462 = dma.done [#allocation5], 4096
    $region25: #{tpu_custom_call.1} parent=1 // pred_fallthru
      _
    %1463 = vsyncpa [#allocation3], 1
    %1464 = vsyncpa [#allocation5], 1

</llo_original>
